<compile_context>
chip_gen: v7x
topology: tpu7x:2x2x1
jax: 0.10.0
libtpu: 0.0.40
codegen_flags: <defaults>
</compile_context>

<pallas_src>
import functools
import math

import jax
import jax.numpy as jnp
import numpy as np
from jax import lax
from jax.experimental import pallas as pl
from jax.experimental.pallas import tpu as pltpu

_BN_EPS = 1e-5
_MAX_TILE_M = 16384                 # lane cap per tile (review: 8192-32768)
_VMEM_BUDGET = 20 * 1024 * 1024     # budget for pipelined buffers + temps (v7x: 64 MiB total)
_VMEM_LIMIT = 32 * 1024 * 1024      # scoped limit handed to Mosaic (safe on v5e/v6e/v7x)


def _choose_rows(H, W, Cin, Cout, out_bytes):
    """Pick TR = output rows per grid step.

    Constraints:
      * TR * W is a multiple of 128  -> valid out BlockSpec + lane-dense stores
      * rough double-buffered VMEM footprint stays under _VMEM_BUDGET
      * TR * W <= _MAX_TILE_M
    """
    unit = 128 // math.gcd(W, 128)            # smallest TR with TR*W % 128 == 0
    per_m = (2 * (Cin * 2)                    # input strip, x2 pipelining
             + 2 * (Cout * out_bytes)         # output tile, x2 pipelining
             + 2 * (4 * Cin * 2)              # tap slices + concatenated matmul operand
             + 2 * (Cout * 4)                 # f32 accumulator + pointwise temp
             + 2)                             # boundary mask
    cap_m = max(128, min(_MAX_TILE_M, _VMEM_BUDGET // per_m))
    cap_rows = max(unit, (cap_m // W) // unit * unit)
    want_rows = -(-H // unit) * unit          # whole image, rounded up to `unit`
    tr = min(cap_rows, want_rows)
    hp = -(-H // tr) * tr                     # padded row count (multiple of tr)
    return tr, hp


def _conv_tile(xs_ref, w_ref, keep_ref, *, W, tile_m):
    """Conv for one row tile: build the 4 k=2 taps in VMEM, one bf16 MXU matmul.

    xs_ref:   (1, 1, Cin, (TR+2)*W) bf16  flattened input strip (1-row halo)
    w_ref:    (Cout, 4*Cin)         bf16  flattened conv weight (tap-major, ch inner)
    keep_ref: (1, tile_m)           bf16  0/1 mask zeroing dx=1 taps at the last column
    returns   (Cout, tile_m)        f32   conv output for the tile (no bias)
    """
    keep = keep_ref[...]
    # tap (dy, dx) lives at flat offset dy*W + dx of the row-major strip.
    t00 = xs_ref[0, 0, :, pl.ds(0, tile_m)]
    t01 = xs_ref[0, 0, :, pl.ds(1, tile_m)] * keep
    t10 = xs_ref[0, 0, :, pl.ds(W, tile_m)]
    t11 = xs_ref[0, 0, :, pl.ds(W + 1, tile_m)] * keep
    taps = jnp.concatenate([t00, t01, t10, t11], axis=0)       # (4*Cin, tile_m)
    return jnp.dot(w_ref[...], taps, preferred_element_type=jnp.float32)


def _conv_stats_kernel(xs_ref, w_ref, keep_ref, sum_ref, ssq_ref, *, W, tile_m):
    """Pass 1: conv tile + per-tile partial channel sum / sum-of-squares."""
    acc = _conv_tile(xs_ref, w_ref, keep_ref, W=W, tile_m=tile_m)   # (Cout, tile_m) f32
    sum_ref[0, 0] = jnp.sum(acc, axis=1, keepdims=True)
    ssq_ref[0, 0] = jnp.sum(acc * acc, axis=1, keepdims=True)


def _conv_bn_relu_kernel(xs_ref, w_ref, keep_ref, scale_ref, shift_ref, o_ref,
                         *, W, tile_m):
    """Pass 2: conv tile (recomputed) + folded BN (y*scale+shift) + ReLU."""
    acc = _conv_tile(xs_ref, w_ref, keep_ref, W=W, tile_m=tile_m)   # (Cout, tile_m) f32
    y = acc * scale_ref[...] + shift_ref[...]
    o_ref[0] = jnp.maximum(y, 0.0).astype(o_ref.dtype)


def input_layer_forward(x_nchw, weight, bias, gamma, beta, *,
                        out_dtype=None, compute_dtype=jnp.bfloat16):
    """Reproduces Input_layer.forward.

    x_nchw: (N, Cin, H, W) float32
    weight: (Cout, Cin, 2, 2)  Conv2d weight (PyTorch layout)
    bias:   (Cout,)            Conv2d bias (cancelled exactly by BN mean; unused)
    gamma:  (Cout,)            BatchNorm2d weight
    beta:   (Cout,)            BatchNorm2d bias
    out_dtype: output dtype (default: x dtype; pass jnp.bfloat16 to halve store traffic)
    returns (N, Cout, H, W)
    """
    del bias  # per-channel constant is removed by BN's mean subtraction
    N, Cin, H, W = x_nchw.shape
    Cout = weight.shape[0]
    out_dtype = x_nchw.dtype if out_dtype is None else out_dtype

    tr, hp = _choose_rows(H, W, Cin, Cout, jnp.dtype(out_dtype).itemsize)
    R = hp // tr
    tile_m = tr * W
    ls = (tr + 2) * W          # strip length: TR rows + 1 halo row + 1 spare row

    # ---- wrapper-side layout prep (single cheap pass over x) ----------------
    # bf16 cast + zero rows appended (asymmetric 'same' padding: 0 before / 1
    # after; rows >= H are zeros so padded tiles add nothing to the BN stats).
    x_bf = x_nchw.astype(compute_dtype)
    x_zp = jnp.pad(x_bf, ((0, 0), (0, 0), (0, hp + 2 - H), (0, 0)))
    # Overlapping row strips flattened row-major onto the lane axis.
    strips = jnp.stack(
        [x_zp[:, :, r * tr: r * tr + tr + 2, :] for r in range(R)], axis=1)
    strips = strips.reshape(N, R, Cin, ls)

    # Flattened conv weight: (Cout, Cin, 2, 2) -> (Cout, 2, 2, Cin) -> (Cout, 4*Cin),
    # i.e. tap-major (dy, dx) with channels innermost — matches the tap concat order.
    w_mat = jnp.transpose(weight, (0, 2, 3, 1)).reshape(Cout, 4 * Cin)
    w_mat = w_mat.astype(compute_dtype)

    # 0/1 mask killing the dx=1 taps at the last image column (column W-1), where
    # the flat lane slice would otherwise wrap to column 0 of the next row.
    col = jnp.arange(tile_m, dtype=jnp.int32) % W
    keep = (col != (W - 1)).astype(compute_dtype).reshape(1, tile_m)

    grid = (N, R)
    xs_spec = pl.BlockSpec((1, 1, Cin, ls), lambda n, r: (n, r, 0, 0))
    w_spec = pl.BlockSpec((Cout, 4 * Cin), lambda n, r: (0, 0))
    keep_spec = pl.BlockSpec((1, tile_m), lambda n, r: (0, 0))

    # ---- Pass 1: conv + per-tile partial BN statistics (fully parallel grid) --
    sums, ssqs = pl.pallas_call(
        functools.partial(_conv_stats_kernel, W=W, tile_m=tile_m),
        grid=grid,
        in_specs=[xs_spec, w_spec, keep_spec],
        out_specs=[pl.BlockSpec((1, 1, Cout, 1), lambda n, r: (n, r, 0, 0)),
                   pl.BlockSpec((1, 1, Cout, 1), lambda n, r: (n, r, 0, 0))],
        out_shape=[jax.ShapeDtypeStruct((N, R, Cout, 1), jnp.float32),
                   jax.ShapeDtypeStruct((N, R, Cout, 1), jnp.float32)],
        compiler_params=pltpu.CompilerParams(
            dimension_semantics=("parallel", "parallel"),
            vmem_limit_bytes=_VMEM_LIMIT),
    )(strips, w_mat, keep)

    # Tiny BN folding in plain JAX (training-mode / biased variance).
    count = jnp.float32(N * H * W)                 # true pixel count (padding excluded)
    ch_sum = jnp.sum(sums, axis=(0, 1))[:, 0]
    ch_ssq = jnp.sum(ssqs, axis=(0, 1))[:, 0]
    mean = ch_sum / count
    var = jnp.maximum(ch_ssq / count - mean * mean, 0.0)
    scale = gamma.astype(jnp.float32) * lax.rsqrt(var + _BN_EPS)
    shift = beta.astype(jnp.float32) - mean * scale

    # ---- Pass 2: conv recomputed + scale/shift + ReLU, lane-dense NCHW stores --
    out = pl.pallas_call(
        functools.partial(_conv_bn_relu_kernel, W=W, tile_m=tile_m),
        grid=grid,
        in_specs=[xs_spec, w_spec, keep_spec,
                  pl.BlockSpec((Cout, 1), lambda n, r: (0, 0)),
                  pl.BlockSpec((Cout, 1), lambda n, r: (0, 0))],
        out_specs=pl.BlockSpec((1, Cout, tile_m), lambda n, r: (n, 0, r)),
        out_shape=jax.ShapeDtypeStruct((N, Cout, hp * W), out_dtype),
        compiler_params=pltpu.CompilerParams(
            dimension_semantics=("parallel", "parallel"),
            vmem_limit_bytes=_VMEM_LIMIT),
    )(strips, w_mat, keep, scale.reshape(Cout, 1), shift.reshape(Cout, 1))

    out = out.reshape(N, Cout, hp, W)
    if hp != H:                     # drop zero rows added only for tiling
        out = out[:, :, :H, :]
    return out


def _reference_forward(x_nchw, weight, bias, gamma, beta):
    """Pure-JAX f32 reference (Conv2d 'same' + BN(training) + ReLU)."""
    y = lax.conv_general_dilated(
        x_nchw.astype(jnp.float32), weight.astype(jnp.float32),
        window_strides=(1, 1), padding=((0, 1), (0, 1)),
        dimension_numbers=("NCHW", "OIHW", "NCHW"),
        precision=lax.Precision.HIGHEST)
    y = y + bias[None, :, None, None]
    mean = jnp.mean(y, axis=(0, 2, 3), keepdims=True)
    var = jnp.mean((y - mean) ** 2, axis=(0, 2, 3), keepdims=True)
    y = (y - mean) * lax.rsqrt(var + _BN_EPS)
    y = y * gamma[None, :, None, None] + beta[None, :, None, None]
    return jnp.maximum(y, 0.0)


if __name__ == "__main__":
    key = jax.random.PRNGKey(0)
    k_x, k_w, k_b = jax.random.split(key, 3)

    N, Cin, H, W = 2, 4, 16, 16
    Cout = 8

    x = jax.random.normal(k_x, (N, Cin, H, W), dtype=jnp.float32)

    # Deterministic synthetic parameters (shapes follow nn.Conv2d / BatchNorm2d).
    fan_in = Cin * 2 * 2
    bound = 1.0 / np.sqrt(fan_in)
    weight = jax.random.uniform(k_w, (Cout, Cin, 2, 2), jnp.float32, -bound, bound)
    bias = jax.random.uniform(k_b, (Cout,), jnp.float32, -bound, bound)
    gamma = jnp.ones((Cout,), jnp.float32)   # BatchNorm2d default init
    beta = jnp.zeros((Cout,), jnp.float32)

    out = jax.block_until_ready(input_layer_forward(x, weight, bias, gamma, beta))
    ref = jax.block_until_ready(_reference_forward(x, weight, bias, gamma, beta))

    # Tolerance accounts for bf16 MXU operands (f32 accumulation).
    np.testing.assert_allclose(np.asarray(out), np.asarray(ref),
                               rtol=2e-2, atol=2e-2)
    assert out.shape == (N, Cout, H, W)
    print("KERNEL_OK")
</pallas_src>

<mosaic_0001>
module attributes {stable_mosaic.version = 11 : i64} {
  func.func @_conv_stats_kernel(%arg0: i32, %arg1: i32, %arg2: memref<1x1x4x288xbf16, #tpu.memory_space<vmem>>, %arg3: memref<8x16xbf16, #tpu.memory_space<vmem>>, %arg4: memref<1x256xbf16, #tpu.memory_space<vmem>>, %arg5: memref<1x1x8x1xf32, #tpu.memory_space<vmem>>, %arg6: memref<1x1x8x1xf32, #tpu.memory_space<vmem>>) attributes {dimension_semantics = [#tpu.dimension_semantics<parallel>, #tpu.dimension_semantics<parallel>], iteration_bounds = array<i64: 2, 1>, scalar_prefetch = 0 : i64, scratch_operands = 0 : i64, tpu.core_type = #tpu.core_type<tc>, window_params = [{transform_indices = @transform_0, window_bounds = array<i64: 1, 1, 4, 288>}, {pipeline_mode = #tpu.pipeline_mode<synchronous>, transform_indices = @transform_1, window_bounds = array<i64: 8, 16>}, {pipeline_mode = #tpu.pipeline_mode<synchronous>, transform_indices = @transform_2, window_bounds = array<i64: 1, 256>}, {transform_indices = @transform_3, window_bounds = array<i64: 1, 1, 8, 1>}, {transform_indices = @transform_4, window_bounds = array<i64: 1, 1, 8, 1>}]} {
    %c0 = arith.constant 0 : index
    %c0_0 = arith.constant 0 : index
    %0 = vector.load %arg4[%c0, %c0_0] : memref<1x256xbf16, #tpu.memory_space<vmem>>, vector<1x256xbf16>
    %c0_1 = arith.constant 0 : index
    %c0_2 = arith.constant 0 : index
    %c0_3 = arith.constant 0 : index
    %c0_4 = arith.constant 0 : index
    %1 = vector.load %arg2[%c0_1, %c0_2, %c0_3, %c0_4] : memref<1x1x4x288xbf16, #tpu.memory_space<vmem>>, vector<1x1x4x256xbf16>
    %2 = vector.shape_cast %1 : vector<1x1x4x256xbf16> to vector<4x256xbf16>
    %c0_5 = arith.constant 0 : index
    %c0_6 = arith.constant 0 : index
    %c0_7 = arith.constant 0 : index
    %c1 = arith.constant 1 : index
    %3 = vector.load %arg2[%c0_5, %c0_6, %c0_7, %c1] : memref<1x1x4x288xbf16, #tpu.memory_space<vmem>>, vector<1x1x4x256xbf16>
    %4 = vector.shape_cast %3 : vector<1x1x4x256xbf16> to vector<4x256xbf16>
    %5 = vector.broadcast %0 : vector<1x256xbf16> to vector<4x256xbf16>
    %6 = arith.mulf %4, %5 : vector<4x256xbf16>
    %c0_8 = arith.constant 0 : index
    %c0_9 = arith.constant 0 : index
    %c0_10 = arith.constant 0 : index
    %c16 = arith.constant 16 : index
    %7 = vector.load %arg2[%c0_8, %c0_9, %c0_10, %c16] : memref<1x1x4x288xbf16, #tpu.memory_space<vmem>>, vector<1x1x4x256xbf16>
    %8 = vector.shape_cast %7 : vector<1x1x4x256xbf16> to vector<4x256xbf16>
    %c0_11 = arith.constant 0 : index
    %c0_12 = arith.constant 0 : index
    %c0_13 = arith.constant 0 : index
    %c17 = arith.constant 17 : index
    %9 = vector.load %arg2[%c0_11, %c0_12, %c0_13, %c17] : memref<1x1x4x288xbf16, #tpu.memory_space<vmem>>, vector<1x1x4x256xbf16>
    %10 = vector.shape_cast %9 : vector<1x1x4x256xbf16> to vector<4x256xbf16>
    %11 = vector.broadcast %0 : vector<1x256xbf16> to vector<4x256xbf16>
    %12 = arith.mulf %10, %11 : vector<4x256xbf16>
    %13 = tpu.concatenate %2, %6, %8, %12 in 0 : vector<4x256xbf16>, vector<4x256xbf16>, vector<4x256xbf16>, vector<4x256xbf16> -> vector<16x256xbf16>
    %c0_14 = arith.constant 0 : index
    %c0_15 = arith.constant 0 : index
    %14 = vector.load %arg3[%c0_14, %c0_15] : memref<8x16xbf16, #tpu.memory_space<vmem>>, vector<8x16xbf16>
    %cst = arith.constant dense<0.000000e+00> : vector<8x256xf32>
    %15 = tpu.matmul %14, %13, %cst {dimension_numbers = #tpu.dot_dimension_numbers<[1], [0], [0], [1], [0, 0, 1, 1], [], []>} : vector<8x16xbf16>, vector<16x256xbf16>, vector<8x256xf32> -> vector<8x256xf32>
    %cst_16 = arith.constant dense<0.000000e+00> : vector<8xf32>
    %16 = vector.multi_reduction <add>, %15, %cst_16 [1] : vector<8x256xf32> to vector<8xf32>
    %17 = vector.shape_cast %16 : vector<8xf32> to vector<8x1xf32>
    %c0_17 = arith.constant 0 : index
    %c0_18 = arith.constant 0 : index
    %c0_19 = arith.constant 0 : index
    %c0_20 = arith.constant 0 : index
    %18 = vector.load %arg5[%c0_17, %c0_18, %c0_19, %c0_20] : memref<1x1x8x1xf32, #tpu.memory_space<vmem>>, vector<1x1x8x1xf32>
    %19 = vector.shape_cast %18 : vector<1x1x8x1xf32> to vector<8x1xf32>
    %20 = vector.shape_cast %17 : vector<8x1xf32> to vector<1x1x8x1xf32>
    tpu.vector_store %arg5[%c0_17, %c0_18, %c0_19, %c0_20], %20 {strides = array<i32>} : memref<1x1x8x1xf32, #tpu.memory_space<vmem>>, vector<1x1x8x1xf32>,
    %21 = arith.mulf %15, %15 : vector<8x256xf32>
    %cst_21 = arith.constant dense<0.000000e+00> : vector<8xf32>
    %22 = vector.multi_reduction <add>, %21, %cst_21 [1] : vector<8x256xf32> to vector<8xf32>
    %23 = vector.shape_cast %22 : vector<8xf32> to vector<8x1xf32>
    %c0_22 = arith.constant 0 : index
    %c0_23 = arith.constant 0 : index
    %c0_24 = arith.constant 0 : index
    %c0_25 = arith.constant 0 : index
    %24 = vector.load %arg6[%c0_22, %c0_23, %c0_24, %c0_25] : memref<1x1x8x1xf32, #tpu.memory_space<vmem>>, vector<1x1x8x1xf32>
    %25 = vector.shape_cast %24 : vector<1x1x8x1xf32> to vector<8x1xf32>
    %26 = vector.shape_cast %23 : vector<8x1xf32> to vector<1x1x8x1xf32>
    tpu.vector_store %arg6[%c0_22, %c0_23, %c0_24, %c0_25], %26 {strides = array<i32>} : memref<1x1x8x1xf32, #tpu.memory_space<vmem>>, vector<1x1x8x1xf32>,
    return
  }
  func.func @transform_0(%arg0: i32, %arg1: i32) -> (i32, i32, i32, i32) {
    %c0_i32 = arith.constant 0 : i32
    %c0_i32_0 = arith.constant 0 : i32
    %c0_i32_1 = arith.constant 0 : i32
    return %arg0, %arg1, %c0_i32, %c0_i32_0 : i32, i32, i32, i32
  }
  func.func @transform_1(%arg0: i32, %arg1: i32) -> (i32, i32) {
    %c0_i32 = arith.constant 0 : i32
    %c0_i32_0 = arith.constant 0 : i32
    %c0_i32_1 = arith.constant 0 : i32
    return %c0_i32, %c0_i32_0 : i32, i32
  }
  func.func @transform_2(%arg0: i32, %arg1: i32) -> (i32, i32) {
    %c0_i32 = arith.constant 0 : i32
    %c0_i32_0 = arith.constant 0 : i32
    %c0_i32_1 = arith.constant 0 : i32
    return %c0_i32, %c0_i32_0 : i32, i32
  }
  func.func @transform_3(%arg0: i32, %arg1: i32) -> (i32, i32, i32, i32) {
    %c0_i32 = arith.constant 0 : i32
    %c0_i32_0 = arith.constant 0 : i32
    %c0_i32_1 = arith.constant 0 : i32
    return %arg0, %arg1, %c0_i32, %c0_i32_0 : i32, i32, i32, i32
  }
  func.func @transform_4(%arg0: i32, %arg1: i32) -> (i32, i32, i32, i32) {
    %c0_i32 = arith.constant 0 : i32
    %c0_i32_0 = arith.constant 0 : i32
    %c0_i32_1 = arith.constant 0 : i32
    return %arg0, %arg1, %c0_i32, %c0_i32_0 : i32, i32, i32, i32
  }
}

</mosaic_0001>

<llo_original>
// kernel: tpu_custom_call.1
$region0: #{tpu_custom_call.1}
  #allocation0 [shape = 'u32[]', space=smem, size = 0x4, offset = 0x4, fixed_abs, tag = 'smem constant byte address 0x4 - core index']
  #allocation1 [shape = 'u32[144,128]{1,0:T(1,128)}', space=vmem, size = 0x12000, scoped, tag = 'internal scratch']
  %s0 = inlined_call_operand.hbm [shape: bf16[2,1,4,288], index: 0, kind: input, shape index: {}]
  %s1 = inlined_call_operand.hbm [shape: bf16[8,16], index: 1, kind: input, shape index: {}]
  %s2 = inlined_call_operand.vmem [shape: bf16[1,256], index: 2, kind: input, shape index: {}]
  %s3 = inlined_call_operand.vmem [shape: f32[2,1,8,1], index: 3, kind: output, shape index: {0}]
  %s4 = inlined_call_operand.vmem [shape: f32[2,1,8,1], index: 4, kind: output, shape index: {1}]
  %5 = xla_tuple %s3, %s4
  %s6 = sld [smem:[#allocation0]]
  $region61: #{tpu_custom_call.1} parent=0
    _
  %s8 = ssub.s32 1, %s6
  %s9 = scalar_select 0, %s8, %s6
  $region1: #{tpu_custom_call.1} parent=0
    #allocation2 [shape = 'u8[6144]{0}', space=vmem, size = 0x1800, scoped, tag = 'input window, operand 0']
    #allocation3 [shape = 's32[2]{0}', space=sflag, size = 0x8, scoped, tag = 'scoped memory for tpu_custom_call.1']
    #allocation4 [shape = 'u8[2048]{0}', space=vmem, size = 0x800, scoped, tag = 'input window, operand 1, single buffered']
    #allocation5 [shape = 's32[1]{0}', space=sflag, size = 0x4, scoped, tag = 'scoped memory for tpu_custom_call.1']
    %10 = vsyncpa [#allocation3], 0
    %s11 = scalar_lea.sflag [#allocation3], 1
    %12 = vsyncpa %s11, 0
    %13 = vsyncpa [#allocation5], 0
    loop: start=0, step=1, limit=4
    $region2: #{tpu_custom_call.1} parent=1 // loop_pre_header
      _
    $region3: #{tpu_custom_call.1} parent=1 // loop_header
      %s15 = sphi 0, %s19
      %p16 = scmp.ge.s32.totalorder %s15, 4
      %s22 = sphi 0, %s34
      %s23 = sphi 0, %s30
      %s24 = sphi 0, %s22
      %s25 = sphi 0, %s23
      %s26 = sphi 0, %s24
      %s27 = sphi 0, %s25
      %s39 = sphi 0, %s41
      %s42 = sphi 0, %s39
      %s43 = sphi 0, %s42
      %s59 = sphi 0, %s43
      %s63 = sphi 0, %s63
      %s65 = sphi 0, %s63
      %s66 = sphi 0, %s65
      %s80 = sphi 0, %s66
      %s84 = sphi 0, %s84
      %s86 = sphi 0, %s84
      %s87 = sphi 0, %s86
      %s101 = sphi 0, %s87
      %s109 = sphi 0, %s111
      %s112 = sphi 0, %s109
      %s113 = sphi 0, %s112
      %s129 = sphi 0, %s113
      %s137 = sphi 0, %s139
      %s140 = sphi 0, %s137
      %s141 = sphi 0, %s140
      %s157 = sphi 0, %s141
    $region4: #{tpu_custom_call.1} parent=1 // loop_header_branch
      %18 = sbr.rel (%p16) target = $region8
    $region5: #{tpu_custom_call.1} parent=1 // loop_body
      %s20 = ssub.s32 %s15, 1
      %s21 = ssub.s32 %s15, 2
      %s28 = sadd.s32 1, %s23
      %p29 = scmp.ge.s32.totalorder %s28, 1
      %s30 = scalar_select %p29, 0, %s28
      %s31 = sadd.s32 1, %s22
      %s32 = scalar_select %p29, %s31, %s22
      %p33 = scmp.ge.s32.totalorder %s32, 2
      %s34 = scalar_select %p33, 0, %s32
      %s35 = ssub.s32 %s22, %s34
      %s36 = ssub.s32 %s23, %s30
      %s37 = sor.u32 %s35, %s36
      %p38 = scmp.eq.s32.totalorder %s37, 0
      %s40 = sadd.s32 %s39, 1
      %s41 = scalar_select %p38, %s39, %s40
      %p44 = pneg %p38
      %p45 = scmp.eq.s32.totalorder %s15, 1
      %p46 = por %p44, %p45
      %p47 = scmp.ne.s32.totalorder %s39, %s42
      %p48 = scmp.eq.s32.totalorder %s15, 0
      %p49 = por %p47, %p48
      %p50 = scmp.ne.s32.totalorder %s39, %s42
      %p51 = scmp.eq.s32.totalorder %s20, 1
      %p52 = por %p50, %p51
      %p53 = scmp.ne.s32.totalorder %s42, %s43
      %p54 = scmp.eq.s32.totalorder %s20, 0
      %p55 = por %p53, %p54
      %p56 = scmp.ne.s32.totalorder %s42, %s43
      %p57 = scmp.eq.s32.totalorder %s21, 1
      %p58 = por %p56, %p57
      %p60 = scmp.ne.s32.totalorder %s43, %s59
      %p61 = scmp.eq.s32.totalorder %s21, 0
      %p62 = por %p60, %p61
      %s64 = sadd.s32 %s63, 1
      %p67 = scmp.eq.s32.totalorder %s15, 1
      %p68 = scmp.ne.s32.totalorder %s63, %s65
      %p69 = scmp.eq.s32.totalorder %s15, 0
      %p70 = por %p68, %p69
      %p71 = scmp.ne.s32.totalorder %s63, %s65
      %p72 = scmp.eq.s32.totalorder %s20, 1
      %p73 = por %p71, %p72
      %p74 = scmp.ne.s32.totalorder %s65, %s66
      %p75 = scmp.eq.s32.totalorder %s20, 0
      %p76 = por %p74, %p75
      %p77 = scmp.ne.s32.totalorder %s65, %s66
      %p78 = scmp.eq.s32.totalorder %s21, 1
      %p79 = por %p77, %p78
      %p81 = scmp.ne.s32.totalorder %s66, %s80
      %p82 = scmp.eq.s32.totalorder %s21, 0
      %p83 = por %p81, %p82
      %s85 = sadd.s32 %s84, 1
      %p88 = scmp.eq.s32.totalorder %s15, 1
      %p89 = scmp.ne.s32.totalorder %s84, %s86
      %p90 = scmp.eq.s32.totalorder %s15, 0
      %p91 = por %p89, %p90
      %p92 = scmp.ne.s32.totalorder %s84, %s86
      %p93 = scmp.eq.s32.totalorder %s20, 1
      %p94 = por %p92, %p93
      %p95 = scmp.ne.s32.totalorder %s86, %s87
      %p96 = scmp.eq.s32.totalorder %s20, 0
      %p97 = por %p95, %p96
      %p98 = scmp.ne.s32.totalorder %s86, %s87
      %p99 = scmp.eq.s32.totalorder %s21, 1
      %p100 = por %p98, %p99
      %p102 = scmp.ne.s32.totalorder %s87, %s101
      %p103 = scmp.eq.s32.totalorder %s21, 0
      %p104 = por %p102, %p103
      %s105 = ssub.s32 %s22, %s34
      %s106 = ssub.s32 %s23, %s30
      %s107 = sor.u32 %s105, %s106
      %p108 = scmp.eq.s32.totalorder %s107, 0
      %s110 = sadd.s32 %s109, 1
      %s111 = scalar_select %p108, %s109, %s110
      %p114 = pneg %p108
      %p115 = scmp.eq.s32.totalorder %s15, 1
      %p116 = por %p114, %p115
      %p117 = scmp.ne.s32.totalorder %s109, %s112
      %p118 = scmp.eq.s32.totalorder %s15, 0
      %p119 = por %p117, %p118
      %p120 = scmp.ne.s32.totalorder %s109, %s112
      %p121 = scmp.eq.s32.totalorder %s20, 1
      %p122 = por %p120, %p121
      %p123 = scmp.ne.s32.totalorder %s112, %s113
      %p124 = scmp.eq.s32.totalorder %s20, 0
      %p125 = por %p123, %p124
      %p126 = scmp.ne.s32.totalorder %s112, %s113
      %p127 = scmp.eq.s32.totalorder %s21, 1
      %p128 = por %p126, %p127
      %p130 = scmp.ne.s32.totalorder %s113, %s129
      %p131 = scmp.eq.s32.totalorder %s21, 0
      %p132 = por %p130, %p131
      %s133 = ssub.s32 %s22, %s34
      %s134 = ssub.s32 %s23, %s30
      %s135 = sor.u32 %s133, %s134
      %p136 = scmp.eq.s32.totalorder %s135, 0
      %s138 = sadd.s32 %s137, 1
      %s139 = scalar_select %p136, %s137, %s138
      %p142 = pneg %p136
      %p143 = scmp.eq.s32.totalorder %s15, 1
      %p144 = por %p142, %p143
      %p145 = scmp.ne.s32.totalorder %s137, %s140
      %p146 = scmp.eq.s32.totalorder %s15, 0
      %p147 = por %p145, %p146
      %p148 = scmp.ne.s32.totalorder %s137, %s140
      %p149 = scmp.eq.s32.totalorder %s20, 1
      %p150 = por %p148, %p149
      %p151 = scmp.ne.s32.totalorder %s140, %s141
      %p152 = scmp.eq.s32.totalorder %s20, 0
      %p153 = por %p151, %p152
      %p154 = scmp.ne.s32.totalorder %s140, %s141
      %p155 = scmp.eq.s32.totalorder %s21, 1
      %p156 = por %p154, %p155
      %p158 = scmp.ne.s32.totalorder %s141, %s157
      %p159 = scmp.eq.s32.totalorder %s21, 0
      %p160 = por %p158, %p159
      %p161 = scmp.le.s32.totalorder 1, %s15
      %p162 = scmp.lt.s32.totalorder %s15, 3
      %p163 = pnand %p161, %p162
      %p164 = pneg %p163
      // Predicated region
      $region9: #{tpu_custom_call.1} parent=5 // pred_check
        _
      $region10: #{tpu_custom_call.1} parent=5 // pred_check_branch
        %166 = sbr.rel (%p163) target = $region12
      $region11: #{tpu_custom_call.1} parent=5 // pred_region
        %s167 = ssub.s32 %s15, 1
        // Predicated region
        $region13: #{tpu_custom_call.1} parent=11 // pred_check
          %p168 = pneg %p76
        $region14: #{tpu_custom_call.1} parent=11 // pred_check_branch
          %170 = sbr.rel (%p168) target = $region16
        $region15: #{tpu_custom_call.1} parent=11 // pred_region
          %s172 = ssub.s32 64, 64
          %173 = vsyncadd [#allocation5], %s172
          %s175 = sshll.u32 [#allocation4], 4
          %s176 = int_to_ptr.vmem [resolvable:$true] %s175
          %178 = dma.hbm_to_vmem [thread:$0]  %s1, 64, %s176, [#allocation5]
        $region16: #{tpu_custom_call.1} parent=11 // pred_fallthru
          _
        // Predicated region
        $region17: #{tpu_custom_call.1} parent=11 // pred_check
          %p179 = pneg %p97
        $region18: #{tpu_custom_call.1} parent=11 // pred_check_branch
          %181 = sbr.rel (%p179) target = $region20
        $region19: #{tpu_custom_call.1} parent=11 // pred_region
          _
        $region20: #{tpu_custom_call.1} parent=11 // pred_fallthru
          _
      $region12: #{tpu_custom_call.1} parent=5 // pred_fallthru
        _
      %p182 = scmp.lt.s32.totalorder %s15, 2
      // Predicated region
      $region21: #{tpu_custom_call.1} parent=5 // pred_check
        %p183 = pneg %p182
      $region22: #{tpu_custom_call.1} parent=5 // pred_check_branch
        %185 = sbr.rel (%p183) target = $region24
      $region23: #{tpu_custom_call.1} parent=5 // pred_region
        // Predicated region
        $region25: #{tpu_custom_call.1} parent=23 // pred_check
          %p186 = pneg %p49
        $region26: #{tpu_custom_call.1} parent=23 // pred_check_branch
          %188 = sbr.rel (%p186) target = $region28
        $region27: #{tpu_custom_call.1} parent=23 // pred_region
          %s189 = sand.u32 %s39, 1
          %s190 = scalar_lea.sflag [#allocation3], %s189
          %s191 = sand.u32 %s39, 1
          %s192 = smul.addr %s191, 6
          %s193 = scalar_lea.vmem [#allocation2], %s192
          %s195 = ssub.s32 96, 96
          %196 = vsyncadd %s190, %s195
          %s197 = smul.addr %s23, 3
          %s198 = smul.addr %s22, 3
          %s199 = sadd.s32 %s197, %s198
          %s200 = smul.addr %s199, 32
          %s201 = scalar_lea.hbm %s0, %s200
          %s203 = sshll.u32 %s193, 4
          %s204 = int_to_ptr.vmem [resolvable:$true] %s203
          %206 = dma.hbm_to_vmem [thread:$0]  %s201, 96, %s204, %s190
        $region28: #{tpu_custom_call.1} parent=23 // pred_fallthru
          _
      $region24: #{tpu_custom_call.1} parent=5 // pred_fallthru
        _
      %p207 = scmp.le.s32.totalorder 1, %s15
      %p208 = scmp.lt.s32.totalorder %s15, 3
      %p209 = pnand %p207, %p208
      %p210 = pneg %p209
      // Predicated region
      $region29: #{tpu_custom_call.1} parent=5 // pred_check
        _
      $region30: #{tpu_custom_call.1} parent=5 // pred_check_branch
        %212 = sbr.rel (%p209) target = $region32
      $region31: #{tpu_custom_call.1} parent=5 // pred_region
        %s213 = ssub.s32 %s15, 1
        %s214 = sand.u32 %s42, 1
        %s215 = scalar_lea.sflag [#allocation3], %s214
        %s216 = sand.u32 %s42, 1
        %s217 = smul.addr %s216, 6
        %s218 = scalar_lea.vmem [#allocation2], %s217
        // Predicated region
        $region33: #{tpu_custom_call.1} parent=31 // pred_check
          %p219 = pneg %p55
        $region34: #{tpu_custom_call.1} parent=31 // pred_check_branch
          %221 = sbr.rel (%p219) target = $region36
        $region35: #{tpu_custom_call.1} parent=31 // pred_region
          %222 = dma.done %s215, 96
        $region36: #{tpu_custom_call.1} parent=31 // pred_fallthru
          _
        // Predicated region
        $region37: #{tpu_custom_call.1} parent=31 // pred_check
          %p223 = pneg %p76
        $region38: #{tpu_custom_call.1} parent=31 // pred_check_branch
          %225 = sbr.rel (%p223) target = $region40
        $region39: #{tpu_custom_call.1} parent=31 // pred_region
          %226 = dma.done [#allocation5], 64
        $region40: #{tpu_custom_call.1} parent=31 // pred_fallthru
          _
        %s227 = sand.u32 %s42, 1
        %s228 = scalar_lea.sflag [#allocation3], %s227
        %s229 = sand.u32 %s42, 1
        %s230 = smul.addr %s229, 6
        %s231 = scalar_lea.vmem [#allocation2], %s230
        %p232 = pneg %p55
        %p233 = pneg %p52
        %p234 = pneg %p76
        %p235 = pneg %p73
        %p236 = pneg %p97
        %p237 = pneg %p94
        %p238 = pneg %p125
        %p239 = pneg %p122
        %p240 = scmp.lt.s32.totalorder %s24, 1
        %s241 = scalar_select %p240, %s24, 1
        %p242 = scmp.lt.s32.totalorder %s25, 0
        %s243 = scalar_select %p242, %s25, 0
        %s244 = sadd.s32 %s243, %s241
        %s245 = smul.addr %s244, 8
        %s246 = scalar_lea.vmem %s3, %s245
        %p247 = pneg %p153
        %p248 = pneg %p150
        %p249 = scmp.lt.s32.totalorder %s24, 1
        %s250 = scalar_select %p249, %s24, 1
        %p251 = scmp.lt.s32.totalorder %s25, 0
        %s252 = scalar_select %p251, %s25, 0
        %s253 = sadd.s32 %s252, %s250
        %s254 = smul.addr %s253, 8
        %s255 = scalar_lea.vmem %s4, %s254
        %p256 = scmp.lt.s32.totalorder %s24, 1
        %s257 = scalar_select %p256, %s24, 1
        %p258 = scmp.lt.s32.totalorder %s25, 0
        %s259 = scalar_select %p258, %s25, 0
        %s260 = sadd.s32 %s259, %s257
        %s261 = smul.addr %s260, 8
        %s262 = scalar_lea.vmem %s3, %s261
        %p263 = scmp.lt.s32.totalorder %s24, 1
        %s264 = scalar_select %p263, %s24, 1
        %p265 = scmp.lt.s32.totalorder %s25, 0
        %s266 = scalar_select %p265, %s25, 0
        %s267 = sadd.s32 %s266, %s264
        %s268 = smul.addr %s267, 8
        %s269 = scalar_lea.vmem %s4, %s268
        %v271 = vld [vmem:[%s2] sm:$0x3]
        %v272 = vld [vmem:[%s218] sm:$0xf]
        %v273 = vld [vmem:[%s218] sm:$0x3f]
        %v276 = vunpack.c.l.s4 1966171168
        %v277 = vunpack.c.0.s8 %v276
        %v278 = vlaneseq
        %v279 = vshrl.u32 %v278, 7
        %v280 = vsub.s32 %v277, %v279
        %v281 = vrot.slane %v271, %v280
        %v282 = vcombine.high %v281, %v281
        %v284 = vunpack.c.l.s4 1966171168
        %v285 = vunpack.c.0.s8 %v284
        %v286 = vlaneseq
        %v287 = vshrl.u32 %v286, 7
        %v288 = vsub.s32 %v285, %v287
        %v289 = vrot.slane %v281, %v288
        %v291 = vunpack.c.l.s4 1966171168
        %v292 = vunpack.c.0.s8 %v291
        %v293 = vlaneseq
        %v294 = vshrl.u32 %v293, 7
        %v295 = vsub.s32 %v292, %v294
        %v296 = vrot.slane %v282, %v295
        %v298 = vpack.i.b16 %v289, %v289
        %v300 = vlaneseq
        %v301 = vshrl.u32 %v300, 7
        %v302 = vsub.s32 0, %v301
        %v303 = vrot.slane %v298, %v302
        %v305 = vpack.i.b16 %v296, %v296
        %v307 = vlaneseq
        %v308 = vshrl.u32 %v307, 7
        %v309 = vsub.s32 0, %v308
        %v310 = vrot.slane %v305, %v309
        %v313 = vcombine.low %v303, %v310
        %v315 = vunpack.c.l.s4 1983009808
        %v316 = vunpack.c.0.s8 %v315
        %v317 = vlaneseq
        %v318 = vshrl.u32 %v317, 7
        %v319 = vsub.s32 %v316, %v318
        %v320 = vrot.slane %v313, %v319
        %321 = vrot.lane.b32.xlu0 %v320, 1
        %v322 = vpop.permute.xlu0 %321
        %v323 = vrot.slane %v322, 6
        %vm324 = vcmask 7168
        %v325 = vsel %vm324, %v323, %v322
        %v327 = vmul.bf16 %v273, %v325
        %328 = vrot.lane.b32.xlu0 %v320, 17
        %v329 = vpop.permute.xlu0 %328
        %v330 = vrot.slane %v329, 6
        %vm331 = vcmask 138240
        %v332 = vsel %vm331, %v330, %v329
        %v334 = vmul.bf16 %v273, %v332
        %v337 = vunpack.c.l.s4 1983009808
        %v338 = vunpack.c.0.s8 %v337
        %v339 = vlaneseq
        %v340 = vshrl.u32 %v339, 7
        %v341 = vsub.s32 %v338, %v340
        %v342 = vrot.slane %v272, %v341
        %v343 = vcombine.high %v342, %v342
        %v345 = vcombine.low %v327, %v327
        %v347 = vunpack.c.l.s4 1983009808
        %v348 = vunpack.c.0.s8 %v347
        %v349 = vlaneseq
        %v350 = vshrl.u32 %v349, 7
        %v351 = vsub.s32 %v348, %v350
        %v352 = vrot.slane %v345, %v351
        %v354 = vunpack.c.l.s4 1983009808
        %v355 = vunpack.c.0.s8 %v354
        %v356 = vlaneseq
        %v357 = vshrl.u32 %v356, 7
        %v358 = vsub.s32 %v355, %v357
        %v359 = vrot.slane %v327, %v358
        %v360 = vcombine.high %v352, %v352
        %361 = vrot.lane.b32.xlu0 %v352, 127
        %v362 = vpop.permute.xlu0 %361
        %363 = vrot.lane.b32.xlu0 %v360, 127
        %v364 = vpop.permute.xlu0 %363
        %365 = vrot.lane.b32.xlu0 %v359, 127
        %v366 = vpop.permute.xlu0 %365
        %vm367 = vcmask 1039360
        %v368 = vsel %vm367, %v362, %v364
        %v369 = vsel %vm367, %v364, %v366
        %v371 = vcombine.high %v273, %v273
        %v373 = vunpack.c.l.s4 1983009808
        %v374 = vunpack.c.0.s8 %v373
        %v375 = vlaneseq
        %v376 = vshrl.u32 %v375, 7
        %v377 = vsub.s32 %v374, %v376
        %v378 = vrot.slane %v273, %v377
        %v380 = vunpack.c.l.s4 1983009808
        %v381 = vunpack.c.0.s8 %v380
        %v382 = vlaneseq
        %v383 = vshrl.u32 %v382, 7
        %v384 = vsub.s32 %v381, %v383
        %v385 = vrot.slane %v371, %v384
        %v386 = vcombine.low %v378, %v378
        %v387 = vcombine.low %v385, %v385
        %388 = vrot.lane.b32.xlu0 %v386, 112
        %v389 = vpop.permute.xlu0 %388
        %390 = vrot.lane.b32.xlu0 %v378, 112
        %v391 = vpop.permute.xlu0 %390
        %392 = vrot.lane.b32.xlu0 %v387, 112
        %v393 = vpop.permute.xlu0 %392
        %vm394 = vcmask 916480
        %v395 = vsel %vm394, %v389, %v391
        %v396 = vsel %vm394, %v391, %v393
        %v398 = vcombine.low %v334, %v334
        %v400 = vunpack.c.l.s4 1983009808
        %v401 = vunpack.c.0.s8 %v400
        %v402 = vlaneseq
        %v403 = vshrl.u32 %v402, 7
        %v404 = vsub.s32 %v401, %v403
        %v405 = vrot.slane %v398, %v404
        %v407 = vunpack.c.l.s4 1983009808
        %v408 = vunpack.c.0.s8 %v407
        %v409 = vlaneseq
        %v410 = vshrl.u32 %v409, 7
        %v411 = vsub.s32 %v408, %v410
        %v412 = vrot.slane %v334, %v411
        %v413 = vcombine.low %v405, %v405
        %v414 = vcombine.low %v412, %v412
        %415 = vrot.lane.b32.xlu0 %v413, 111
        %v416 = vpop.permute.xlu0 %415
        %417 = vrot.lane.b32.xlu0 %v405, 111
        %v418 = vpop.permute.xlu0 %417
        %419 = vrot.lane.b32.xlu0 %v414, 111
        %v420 = vpop.permute.xlu0 %419
        %vm421 = vcmask 908288
        %v422 = vsel %vm421, %v416, %v418
        %v423 = vsel %vm421, %v418, %v420
        %vm424 = vcmask 1041408
        %v427 = vsel %vm424, %v342, %v368
        %v430 = vsel %vm424, %v343, %v369
        %vm431 = vcmask 1043456
        %v433 = vsel %vm431, %v427, %v395
        %v435 = vsel %vm431, %v430, %v396
        %vm436 = vcmask 1045504
        %v438 = vsel %vm436, %v433, %v422
        %v441 = vsel %vm436, %v435, %v423
        %v443 = vld [vmem:[#allocation4] sm:$0xf]
        %vm444 = vcmask 130048
        %v446 = vsel %vm444, %v443, 0
        %448 = vmatprep.subr.bf16.mxu0 %v441
        %449 = vmatpush1.bf16.msra.mxu0 %v438
        %450 = vmatprep.subr.bf16.mxu0 0
        %451 = vmatpush1.bf16.msra.mxu0 0
        %452 = vmatprep.subr.bf16.mxu0 0
        %453 = vmatpush1.bf16.msra.mxu0 0
        %454 = vmatprep.subr.bf16.mxu0 0
        %455 = vmatpush1.bf16.msra.mxu0 0
        %456 = vmatprep.subr.bf16.mxu0 0
        %457 = vmatpush1.bf16.msra.mxu0 0
        %458 = vmatprep.subr.bf16.mxu0 0
        %459 = vmatpush1.bf16.msra.mxu0 0
        %460 = vmatprep.subr.bf16.mxu0 0
        %461 = vmatpush1.bf16.msra.mxu0 0
        %462 = vmatprep.subr.bf16.mxu0 0
        %463 = vmatpush1.bf16.msra.mxu0 0
        %464 = vmatprep.subr.bf16.mxu0 0
        %465 = vmatpush1.bf16.msra.mxu0 0
        %466 = vmatprep.subr.bf16.mxu0 0
        %467 = vmatpush1.bf16.msra.mxu0 0
        %468 = vmatprep.subr.bf16.mxu0 0
        %469 = vmatpush1.bf16.msra.mxu0 0
        %470 = vmatprep.subr.bf16.mxu0 0
        %471 = vmatpush1.bf16.msra.mxu0 0
        %472 = vmatprep.subr.bf16.mxu0 0
        %473 = vmatpush1.bf16.msra.mxu0 0
        %474 = vmatprep.subr.bf16.mxu0 0
        %475 = vmatpush1.bf16.msra.mxu0 0
        %476 = vmatprep.subr.bf16.mxu0 0
        %477 = vmatpush1.bf16.msra.mxu0 0
        %478 = vmatprep.subr.bf16.mxu0 0
        %479 = vmatpush1.bf16.msra.mxu0 0
        %480 = vmatprep.mubr.bf16.mxu0 0
        %481 = vmatmul.mubr.bf16.gmra.mrb[0].mxu0 %v446
        %v482 = vpop.f32.mrb[0].mxu0
        %v483 = vadd.f32 0.0, %v482
        %v484 = vpop.f32.mrb[0].mxu0
        %v485 = vadd.f32 0.0, %v484
        %v486 = vpop.f32.mrb[0].mxu0
        %v487 = vpop.f32.mrb[0].mxu0
        %488 = vdwg.mxu0
        %v489 = vadd.f32 %v483, %v485
        %490 = vadd.xlane.f32.xlu0 %v489
        %v491 = vpop.xlane.xlu0 %490
        %vm492 = vcmask 7168
        %493 = vst.msk [vmem:[%s262] sm:$0xff] %vm492, %v491
        %v494 = vmul.f32 %v483, %v483
        %v495 = vmul.f32 %v485, %v485
        %v496 = vadd.f32 %v494, %v495
        %497 = vadd.xlane.f32.xlu0 %v496
        %v498 = vpop.xlane.xlu0 %497
        %499 = vst.msk [vmem:[%s269] sm:$0xff] %vm492, %v498
        %p500 = scmp.lt.s32.totalorder %s24, 1
        %s501 = scalar_select %p500, %s24, 1
        %p502 = scmp.lt.s32.totalorder %s25, 0
        %s503 = scalar_select %p502, %s25, 0
        %s504 = sadd.s32 %s503, %s501
        %s505 = smul.addr %s504, 8
        %s506 = scalar_lea.vmem %s3, %s505
        %p507 = scmp.lt.s32.totalorder %s24, 1
        %s508 = scalar_select %p507, %s24, 1
        %p509 = scmp.lt.s32.totalorder %s25, 0
        %s510 = scalar_select %p509, %s25, 0
        %s511 = sadd.s32 %s510, %s508
        %s512 = smul.addr %s511, 8
        %s513 = scalar_lea.vmem %s4, %s512
        // Predicated region
        $region41: #{tpu_custom_call.1} parent=31 // pred_check
          %p514 = pneg %p122
        $region42: #{tpu_custom_call.1} parent=31 // pred_check_branch
          %516 = sbr.rel (%p514) target = $region44
        $region43: #{tpu_custom_call.1} parent=31 // pred_region
          _
        $region44: #{tpu_custom_call.1} parent=31 // pred_fallthru
          _
        // Predicated region
        $region45: #{tpu_custom_call.1} parent=31 // pred_check
          %p517 = pneg %p150
        $region46: #{tpu_custom_call.1} parent=31 // pred_check_branch
          %519 = sbr.rel (%p517) target = $region48
        $region47: #{tpu_custom_call.1} parent=31 // pred_region
          _
        $region48: #{tpu_custom_call.1} parent=31 // pred_fallthru
          _
      $region32: #{tpu_custom_call.1} parent=5 // pred_fallthru
        _
      %p520 = scmp.le.s32.totalorder 2, %s15
      // Predicated region
      $region49: #{tpu_custom_call.1} parent=5 // pred_check
        %p521 = pneg %p520
      $region50: #{tpu_custom_call.1} parent=5 // pred_check_branch
        %523 = sbr.rel (%p521) target = $region52
      $region51: #{tpu_custom_call.1} parent=5 // pred_region
        %s524 = ssub.s32 %s15, 2
        // Predicated region
        $region53: #{tpu_custom_call.1} parent=51 // pred_check
          %p525 = pneg %p128
        $region54: #{tpu_custom_call.1} parent=51 // pred_check_branch
          %527 = sbr.rel (%p525) target = $region56
        $region55: #{tpu_custom_call.1} parent=51 // pred_region
          %p528 = scmp.lt.s32.totalorder %s26, 1
          %s529 = scalar_select %p528, %s26, 1
          %p530 = scmp.lt.s32.totalorder %s27, 0
          %s531 = scalar_select %p530, %s27, 0
          %s532 = sadd.s32 %s531, %s529
          %s533 = smul.addr %s532, 8
          %s534 = scalar_lea.vmem %s3, %s533
        $region56: #{tpu_custom_call.1} parent=51 // pred_fallthru
          _
        // Predicated region
        $region57: #{tpu_custom_call.1} parent=51 // pred_check
          %p535 = pneg %p156
        $region58: #{tpu_custom_call.1} parent=51 // pred_check_branch
          %537 = sbr.rel (%p535) target = $region60
        $region59: #{tpu_custom_call.1} parent=51 // pred_region
          %p538 = scmp.lt.s32.totalorder %s26, 1
          %s539 = scalar_select %p538, %s26, 1
          %p540 = scmp.lt.s32.totalorder %s27, 0
          %s541 = scalar_select %p540, %s27, 0
          %s542 = sadd.s32 %s541, %s539
          %s543 = smul.addr %s542, 8
          %s544 = scalar_lea.vmem %s4, %s543
        $region60: #{tpu_custom_call.1} parent=51 // pred_fallthru
          _
      $region52: #{tpu_custom_call.1} parent=5 // pred_fallthru
        _
    $region6: #{tpu_custom_call.1} parent=1 // loop_footer
      %s19 = sadd.s32 1, %s15
    $region7: #{tpu_custom_call.1} parent=1 // loop_footer_branch
      %14 = sbr.rel target = $region3
    $region8: #{tpu_custom_call.1} parent=1 // loop_exit
      _
    %545 = vsyncpa [#allocation3], 1
    %s546 = scalar_lea.sflag [#allocation3], 1
    %547 = vsyncpa %s546, 1
    %548 = vsyncpa [#allocation5], 1

</llo_original>
